<compile_context>
chip_gen: v7x
topology: tpu7x:2x2x1
jax: 0.10.0
libtpu: 0.0.40
codegen_flags: <defaults>
</compile_context>

<pallas_src>
import functools

import jax
import jax.numpy as jnp
from jax.experimental import pallas as pl
from jax.experimental.pallas import tpu as pltpu


def _round_up(n, m):
    return (n + m - 1) // m * m


def mlp_kernel(H, x_ref, w1x_ref, b1_ref, w2_ref, b2_ref,
               w3a_ref, b3_ref, w4_ref, b4_ref, o_ref):
    # x^T tile: (I, TILE_B) bf16 -- features on sublanes, batch on lanes.
    xt = x_ref[...]

    # Fused x-side matmul: (2H, I) @ (I, TILE_B) -> (2H, TILE_B) f32.
    hx = jnp.dot(w1x_ref[...], xt, preferred_element_type=jnp.float32)
    h1_pre = hx[:H, :]    # fc1 pre-bias (sublane-aligned static slice)
    x3 = hx[H:, :]        # fc3 contribution from x

    # fc1 + ReLU
    h1 = jnp.maximum(h1_pre + b1_ref[...], 0.0).astype(jnp.bfloat16)

    # fc2 + ReLU: (H, H) @ (H, TILE_B)
    h2 = jnp.dot(w2_ref[...], h1, preferred_element_type=jnp.float32) + b2_ref[...]
    h2 = jnp.maximum(h2, 0.0).astype(jnp.bfloat16)

    # fc3 on concat([h2, x]) + ReLU: W3a @ h2 + (W3b @ x) + b3
    h3 = (jnp.dot(w3a_ref[...], h2, preferred_element_type=jnp.float32)
          + x3 + b3_ref[...])
    h3 = jnp.maximum(h3, 0.0).astype(jnp.bfloat16)

    # fc4: (1, H) @ (H, TILE_B) -> (1, TILE_B)  == the lane-dense output block.
    o_ref[...] = (jnp.dot(w4_ref[...], h3, preferred_element_type=jnp.float32)
                  + b4_ref[0, 0]).astype(o_ref.dtype)


def mlp_forward(x, params, *, tile_b=8192):
    """x: [B, input_size] (any float dtype). Returns [B, 1] float32."""
    B, I = x.shape
    H = params["w2"].shape[0]

    # Lane-dense batch tiles (multiple of 128). Cap the tile so moderate
    # batches still yield >=2 grid steps (v7x megacore sharding); never below
    # 128 lanes.
    tile_b = max(128, min(_round_up(tile_b, 128), _round_up(pl.cdiv(B, 2), 128)))
    Bp = _round_up(B, tile_b)
    n_tiles = Bp // tile_b

    # Transpose + pad x in the wrapper: kernel consumes (I, TILE_B) bf16 tiles.
    xt = x.astype(jnp.bfloat16).T                  # (I, B)
    if Bp != B:
        xt = jnp.pad(xt, ((0, 0), (0, Bp - B)))    # zero-pad batch lanes

    w1, b1 = params["w1"], params["b1"]            # (H, I), (H, 1)
    w2, b2 = params["w2"], params["b2"]            # (H, H), (H, 1)
    w3a, w3b, b3 = params["w3a"], params["w3b"], params["b3"]
    w4, b4 = params["w4"], params["b4"]            # (1, H), (1, 1)

    # Fused x-side weight: rows [0:H] = fc1, rows [H:2H] = fc3 x-half.
    w1x = jnp.concatenate([w1, w3b], axis=0).astype(jnp.bfloat16)   # (2H, I)

    def full_spec(a):
        nd = a.ndim
        return pl.BlockSpec(a.shape, lambda i, _nd=nd: (0,) * _nd)

    in_specs = [
        pl.BlockSpec((I, tile_b), lambda i: (0, i)),            # x^T tiles (pipelined)
        full_spec(w1x), full_spec(b1),
        full_spec(w2), full_spec(b2),
        full_spec(w3a), full_spec(b3),
        full_spec(w4),
        pl.BlockSpec(memory_space=pltpu.MemorySpace.SMEM),      # b4 scalar
    ]
    out_specs = pl.BlockSpec((1, tile_b), lambda i: (0, i))     # lane-dense output

    flops = 2 * Bp * (2 * H * I + H * H + H * H + H)
    param_bytes = sum(int(p.size) * p.dtype.itemsize
                      for p in (w1x, b1, w2, b2, w3a, b3, w4, b4))
    cost = pl.CostEstimate(
        flops=flops, transcendentals=0,
        bytes_accessed=int(xt.size) * xt.dtype.itemsize + Bp * 4 + param_bytes)

    out_row = pl.pallas_call(
        functools.partial(mlp_kernel, H),
        out_shape=jax.ShapeDtypeStruct((1, Bp), jnp.float32),
        grid=(n_tiles,),
        in_specs=in_specs,
        out_specs=out_specs,
        compiler_params=pltpu.CompilerParams(
            dimension_semantics=("parallel",)),     # batch tiles shard across TCs
        cost_estimate=cost,
    )(xt, w1x, b1, w2, b2, w3a, b3, w4, b4)

    return out_row[0, :B][:, None]                  # back to [B, 1]


def init_params(key, input_size, hidden_size):
    """Weights stored in PyTorch (out_features, in_features) layout, which is
    exactly the transposed layout the kernel consumes."""
    ks = jax.random.split(key, 4)

    def lin(k, fan_in, fan_out):
        bound = 1.0 / jnp.sqrt(fan_in)               # Kaiming-uniform-ish bound
        kw, kb = jax.random.split(k)
        w = jax.random.uniform(kw, (fan_out, fan_in), jnp.float32, -bound, bound)
        b = jax.random.uniform(kb, (fan_out, 1), jnp.float32, -bound, bound)
        return w.astype(jnp.bfloat16), b             # bf16 weights, f32 biases

    w1, b1 = lin(ks[0], input_size, hidden_size)
    w2, b2 = lin(ks[1], hidden_size, hidden_size)
    w3, b3 = lin(ks[2], hidden_size + input_size, hidden_size)
    w4, b4 = lin(ks[3], hidden_size, 1)

    # Split fc3 weight columns: [:, :H] multiplies h2, [:, H:] multiplies x.
    w3a = w3[:, :hidden_size]
    w3b = w3[:, hidden_size:]
    return dict(w1=w1, b1=b1, w2=w2, b2=b2,
                w3a=w3a, w3b=w3b, b3=b3, w4=w4, b4=b4)


def mlp_reference(x, params):
    """Plain-JAX reference mirroring the PyTorch forward with the same
    precision policy as the kernel (bf16 operands, f32 accumulation)."""
    f32 = jnp.float32
    xb = x.astype(jnp.bfloat16)
    h1 = jnp.maximum(jnp.dot(xb, params["w1"].T, preferred_element_type=f32)
                     + params["b1"].T, 0.0).astype(jnp.bfloat16)
    h2 = jnp.maximum(jnp.dot(h1, params["w2"].T, preferred_element_type=f32)
                     + params["b2"].T, 0.0).astype(jnp.bfloat16)
    h3 = jnp.maximum(jnp.dot(h2, params["w3a"].T, preferred_element_type=f32)
                     + jnp.dot(xb, params["w3b"].T, preferred_element_type=f32)
                     + params["b3"].T, 0.0).astype(jnp.bfloat16)
    return jnp.dot(h3, params["w4"].T, preferred_element_type=f32) + params["b4"]


if __name__ == "__main__":
    INPUT_SIZE = 16
    HIDDEN_SIZE = 32

    key = jax.random.PRNGKey(0)
    kx, kp = jax.random.split(key)
    params = init_params(kp, INPUT_SIZE, HIDDEN_SIZE)

    # Small, single-tile case.
    x_small = jax.random.normal(kx, (8, INPUT_SIZE), jnp.float32)
    out_small = jax.block_until_ready(mlp_forward(x_small, params))
    ref_small = mlp_reference(x_small, params)
    assert out_small.shape == (8, 1), out_small.shape
    assert jnp.allclose(out_small, ref_small, atol=2e-2, rtol=2e-2), (out_small, ref_small)

    # Multi-tile case exercising the batch grid, tail padding and megacore path.
    x_big = jax.random.normal(jax.random.PRNGKey(1), (1000, INPUT_SIZE), jnp.float32)
    out_big = jax.block_until_ready(mlp_forward(x_big, params, tile_b=256))
    ref_big = mlp_reference(x_big, params)
    assert out_big.shape == (1000, 1), out_big.shape
    assert jnp.allclose(out_big, ref_big, atol=2e-2, rtol=2e-2)

    # Larger batch on the default (large-tile) path.
    x_huge = jax.random.normal(jax.random.PRNGKey(2), (20000, INPUT_SIZE), jnp.float32)
    out_huge = jax.block_until_ready(mlp_forward(x_huge, params))
    ref_huge = mlp_reference(x_huge, params)
    assert out_huge.shape == (20000, 1), out_huge.shape
    assert jnp.allclose(out_huge, ref_huge, atol=2e-2, rtol=2e-2)

    print("KERNEL_OK")
</pallas_src>

<mosaic_0001>
module attributes {stable_mosaic.version = 11 : i64} {
  func.func @mlp_kernel(%arg0: i32, %arg1: memref<16x128xbf16, #tpu.memory_space<vmem>>, %arg2: memref<64x16xbf16, #tpu.memory_space<vmem>>, %arg3: memref<32x1xf32, #tpu.memory_space<vmem>>, %arg4: memref<32x32xbf16, #tpu.memory_space<vmem>>, %arg5: memref<32x1xf32, #tpu.memory_space<vmem>>, %arg6: memref<32x32xbf16, #tpu.memory_space<vmem>>, %arg7: memref<32x1xf32, #tpu.memory_space<vmem>>, %arg8: memref<1x32xbf16, #tpu.memory_space<vmem>>, %arg9: memref<1x1xf32, #tpu.memory_space<smem>>, %arg10: memref<1x128xf32, #tpu.memory_space<vmem>>) attributes {dimension_semantics = [#tpu.dimension_semantics<parallel>], iteration_bounds = array<i64: 1>, scalar_prefetch = 0 : i64, scratch_operands = 0 : i64, tpu.core_type = #tpu.core_type<tc>, window_params = [{transform_indices = @transform_0, window_bounds = array<i64: 16, 128>}, {pipeline_mode = #tpu.pipeline_mode<synchronous>, transform_indices = @transform_1, window_bounds = array<i64: 64, 16>}, {pipeline_mode = #tpu.pipeline_mode<synchronous>, transform_indices = @transform_2, window_bounds = array<i64: 32, 1>}, {pipeline_mode = #tpu.pipeline_mode<synchronous>, transform_indices = @transform_3, window_bounds = array<i64: 32, 32>}, {pipeline_mode = #tpu.pipeline_mode<synchronous>, transform_indices = @transform_4, window_bounds = array<i64: 32, 1>}, {pipeline_mode = #tpu.pipeline_mode<synchronous>, transform_indices = @transform_5, window_bounds = array<i64: 32, 32>}, {pipeline_mode = #tpu.pipeline_mode<synchronous>, transform_indices = @transform_6, window_bounds = array<i64: 32, 1>}, {pipeline_mode = #tpu.pipeline_mode<synchronous>, transform_indices = @transform_7, window_bounds = array<i64: 1, 32>}, {transform_indices = @transform_8, window_bounds = array<i64: 1, 1>}, {transform_indices = @transform_9, window_bounds = array<i64: 1, 128>}]} {
    %c0 = arith.constant 0 : index
    %c0_0 = arith.constant 0 : index
    %0 = vector.load %arg1[%c0, %c0_0] : memref<16x128xbf16, #tpu.memory_space<vmem>>, vector<16x128xbf16>
    %c0_1 = arith.constant 0 : index
    %c0_2 = arith.constant 0 : index
    %1 = vector.load %arg2[%c0_1, %c0_2] : memref<64x16xbf16, #tpu.memory_space<vmem>>, vector<64x16xbf16>
    %cst = arith.constant dense<0.000000e+00> : vector<64x128xf32>
    %2 = tpu.matmul %1, %0, %cst {dimension_numbers = #tpu.dot_dimension_numbers<[1], [0], [0], [1], [0, 0, 1, 1], [], []>} : vector<64x16xbf16>, vector<16x128xbf16>, vector<64x128xf32> -> vector<64x128xf32>
    %3 = vector.extract_strided_slice %2 {offsets = [0, 0], sizes = [32, 128], strides = [1, 1]} : vector<64x128xf32> to vector<32x128xf32>
    %4 = vector.extract_strided_slice %2 {offsets = [32, 0], sizes = [32, 128], strides = [1, 1]} : vector<64x128xf32> to vector<32x128xf32>
    %c0_3 = arith.constant 0 : index
    %c0_4 = arith.constant 0 : index
    %5 = vector.load %arg3[%c0_3, %c0_4] : memref<32x1xf32, #tpu.memory_space<vmem>>, vector<32x1xf32>
    %6 = vector.broadcast %5 : vector<32x1xf32> to vector<32x128xf32>
    %7 = arith.addf %3, %6 : vector<32x128xf32>
    %cst_5 = arith.constant 0.000000e+00 : f32
    %8 = vector.broadcast %cst_5 : f32 to vector<32x128xf32>
    %9 = arith.maximumf %7, %8 : vector<32x128xf32>
    %10 = arith.truncf %9 : vector<32x128xf32> to vector<32x128xbf16>
    %c0_6 = arith.constant 0 : index
    %c0_7 = arith.constant 0 : index
    %11 = vector.load %arg4[%c0_6, %c0_7] : memref<32x32xbf16, #tpu.memory_space<vmem>>, vector<32x32xbf16>
    %cst_8 = arith.constant dense<0.000000e+00> : vector<32x128xf32>
    %12 = tpu.matmul %11, %10, %cst_8 {dimension_numbers = #tpu.dot_dimension_numbers<[1], [0], [0], [1], [0, 0, 1, 1], [], []>} : vector<32x32xbf16>, vector<32x128xbf16>, vector<32x128xf32> -> vector<32x128xf32>
    %c0_9 = arith.constant 0 : index
    %c0_10 = arith.constant 0 : index
    %13 = vector.load %arg5[%c0_9, %c0_10] : memref<32x1xf32, #tpu.memory_space<vmem>>, vector<32x1xf32>
    %14 = vector.broadcast %13 : vector<32x1xf32> to vector<32x128xf32>
    %15 = arith.addf %12, %14 : vector<32x128xf32>
    %cst_11 = arith.constant 0.000000e+00 : f32
    %16 = vector.broadcast %cst_11 : f32 to vector<32x128xf32>
    %17 = arith.maximumf %15, %16 : vector<32x128xf32>
    %18 = arith.truncf %17 : vector<32x128xf32> to vector<32x128xbf16>
    %c0_12 = arith.constant 0 : index
    %c0_13 = arith.constant 0 : index
    %19 = vector.load %arg6[%c0_12, %c0_13] : memref<32x32xbf16, #tpu.memory_space<vmem>>, vector<32x32xbf16>
    %cst_14 = arith.constant dense<0.000000e+00> : vector<32x128xf32>
    %20 = tpu.matmul %19, %18, %cst_14 {dimension_numbers = #tpu.dot_dimension_numbers<[1], [0], [0], [1], [0, 0, 1, 1], [], []>} : vector<32x32xbf16>, vector<32x128xbf16>, vector<32x128xf32> -> vector<32x128xf32>
    %21 = arith.addf %20, %4 : vector<32x128xf32>
    %c0_15 = arith.constant 0 : index
    %c0_16 = arith.constant 0 : index
    %22 = vector.load %arg7[%c0_15, %c0_16] : memref<32x1xf32, #tpu.memory_space<vmem>>, vector<32x1xf32>
    %23 = vector.broadcast %22 : vector<32x1xf32> to vector<32x128xf32>
    %24 = arith.addf %21, %23 : vector<32x128xf32>
    %cst_17 = arith.constant 0.000000e+00 : f32
    %25 = vector.broadcast %cst_17 : f32 to vector<32x128xf32>
    %26 = arith.maximumf %24, %25 : vector<32x128xf32>
    %27 = arith.truncf %26 : vector<32x128xf32> to vector<32x128xbf16>
    %c0_18 = arith.constant 0 : index
    %c0_19 = arith.constant 0 : index
    %28 = vector.load %arg8[%c0_18, %c0_19] : memref<1x32xbf16, #tpu.memory_space<vmem>>, vector<1x32xbf16>
    %cst_20 = arith.constant dense<0.000000e+00> : vector<1x128xf32>
    %29 = tpu.matmul %28, %27, %cst_20 {dimension_numbers = #tpu.dot_dimension_numbers<[1], [0], [0], [1], [0, 0, 1, 1], [], []>} : vector<1x32xbf16>, vector<32x128xbf16>, vector<1x128xf32> -> vector<1x128xf32>
    %c0_21 = arith.constant 0 : index
    %c0_22 = arith.constant 0 : index
    %30 = memref.load %arg9[%c0_21, %c0_22] : memref<1x1xf32, #tpu.memory_space<smem>>
    %31 = vector.broadcast %30 : f32 to vector<1x128xf32>
    %32 = arith.addf %29, %31 : vector<1x128xf32>
    %c0_23 = arith.constant 0 : index
    %c0_24 = arith.constant 0 : index
    %33 = vector.load %arg10[%c0_23, %c0_24] : memref<1x128xf32, #tpu.memory_space<vmem>>, vector<1x128xf32>
    tpu.vector_store %arg10[%c0_23, %c0_24], %32 {strides = array<i32>} : memref<1x128xf32, #tpu.memory_space<vmem>>, vector<1x128xf32>,
    return
  }
  func.func @transform_0(%arg0: i32) -> (i32, i32) {
    %c0_i32 = arith.constant 0 : i32
    %c0_i32_0 = arith.constant 0 : i32
    return %c0_i32, %arg0 : i32, i32
  }
  func.func @transform_1(%arg0: i32) -> (i32, i32) {
    %c0_i32 = arith.constant 0 : i32
    %c0_i32_0 = arith.constant 0 : i32
    %c0_i32_1 = arith.constant 0 : i32
    return %c0_i32, %c0_i32_0 : i32, i32
  }
  func.func @transform_2(%arg0: i32) -> (i32, i32) {
    %c0_i32 = arith.constant 0 : i32
    %c0_i32_0 = arith.constant 0 : i32
    %c0_i32_1 = arith.constant 0 : i32
    return %c0_i32, %c0_i32_0 : i32, i32
  }
  func.func @transform_3(%arg0: i32) -> (i32, i32) {
    %c0_i32 = arith.constant 0 : i32
    %c0_i32_0 = arith.constant 0 : i32
    %c0_i32_1 = arith.constant 0 : i32
    return %c0_i32, %c0_i32_0 : i32, i32
  }
  func.func @transform_4(%arg0: i32) -> (i32, i32) {
    %c0_i32 = arith.constant 0 : i32
    %c0_i32_0 = arith.constant 0 : i32
    %c0_i32_1 = arith.constant 0 : i32
    return %c0_i32, %c0_i32_0 : i32, i32
  }
  func.func @transform_5(%arg0: i32) -> (i32, i32) {
    %c0_i32 = arith.constant 0 : i32
    %c0_i32_0 = arith.constant 0 : i32
    %c0_i32_1 = arith.constant 0 : i32
    return %c0_i32, %c0_i32_0 : i32, i32
  }
  func.func @transform_6(%arg0: i32) -> (i32, i32) {
    %c0_i32 = arith.constant 0 : i32
    %c0_i32_0 = arith.constant 0 : i32
    %c0_i32_1 = arith.constant 0 : i32
    return %c0_i32, %c0_i32_0 : i32, i32
  }
  func.func @transform_7(%arg0: i32) -> (i32, i32) {
    %c0_i32 = arith.constant 0 : i32
    %c0_i32_0 = arith.constant 0 : i32
    %c0_i32_1 = arith.constant 0 : i32
    return %c0_i32, %c0_i32_0 : i32, i32
  }
  func.func @transform_8(%arg0: i32) -> (i32, i32) {
    %c0_i32 = arith.constant 0 : i32
    %c0_i32_0 = arith.constant 0 : i32
    %c0_i32_1 = arith.constant 0 : i32
    return %c0_i32, %c0_i32_0 : i32, i32
  }
  func.func @transform_9(%arg0: i32) -> (i32, i32) {
    %c0_i32 = arith.constant 0 : i32
    %c0_i32_0 = arith.constant 0 : i32
    return %c0_i32, %arg0 : i32, i32
  }
}

</mosaic_0001>

<llo_original>
// kernel: tpu_custom_call.1
$region0: #{tpu_custom_call.1}
  #allocation0 [shape = 'u32[]', space=smem, size = 0x4, offset = 0x4, fixed_abs, tag = 'smem constant byte address 0x4 - core index']
  #allocation1 [shape = 'u32[144,128]{1,0:T(1,128)}', space=vmem, size = 0x12000, scoped, tag = 'internal scratch']
  #allocation2 [shape = 'f32[1,1]{1,0:T(1,128)S(6)}', space=smem, size = 0x200, scoped, tag = 'scoped memory for tpu_custom_call.1']
  %s0 = inlined_call_operand.vmem [shape: bf16[16,128], index: 0, kind: input, shape index: {}]
  %s1 = inlined_call_operand.vmem [shape: bf16[64,16], index: 1, kind: input, shape index: {}]
  %s2 = inlined_call_operand.vmem [shape: f32[32,1], index: 2, kind: input, shape index: {}]
  %s3 = inlined_call_operand.vmem [shape: bf16[32,32], index: 3, kind: input, shape index: {}]
  %s4 = inlined_call_operand.vmem [shape: f32[32,1], index: 4, kind: input, shape index: {}]
  %s5 = inlined_call_operand.vmem [shape: bf16[32,32], index: 5, kind: input, shape index: {}]
  %s6 = inlined_call_operand.vmem [shape: f32[32,1], index: 6, kind: input, shape index: {}]
  %s7 = inlined_call_operand.vmem [shape: bf16[1,32], index: 7, kind: input, shape index: {}]
  %s8 = inlined_call_operand.<no memory space> [shape: f32[1,1], index: 8, kind: input, shape index: {}]
  %s9 = inlined_call_operand.hbm [shape: f32[1,128], index: 9, kind: output, shape index: {}]
  %s10 = sld [smem:[#allocation0]]
  $region46: #{tpu_custom_call.1} parent=0
    _
  %s12 = ssub.s32 1, %s10
  %s13 = scalar_select 0, %s12, %s10
  %14 = sst [smem:[#allocation2]] %s8
  $region1: #{tpu_custom_call.1} parent=0
    #allocation3 [shape = 'u8[512]{0}', space=vmem, size = 0x400, scoped, tag = 'output window, operand 0, single buffered']
    #allocation4 [shape = 's32[1]{0}', space=sflag, size = 0x4, scoped, tag = 'scoped memory for tpu_custom_call.1']
    %15 = vsyncpa [#allocation4], 0
    // Predicated region
    $region2: #{tpu_custom_call.1} parent=1 // pred_check
      _
    $region3: #{tpu_custom_call.1} parent=1 // pred_check_branch
      %17 = sbr.rel (0) target = $region5
    $region4: #{tpu_custom_call.1} parent=1 // pred_region
      _
    $region5: #{tpu_custom_call.1} parent=1 // pred_fallthru
      _
    // Predicated region
    $region6: #{tpu_custom_call.1} parent=1 // pred_check
      _
    $region7: #{tpu_custom_call.1} parent=1 // pred_check_branch
      %19 = sbr.rel (0) target = $region9
    $region8: #{tpu_custom_call.1} parent=1 // pred_region
      _
    $region9: #{tpu_custom_call.1} parent=1 // pred_fallthru
      _
    // Predicated region
    $region10: #{tpu_custom_call.1} parent=1 // pred_check
      _
    $region11: #{tpu_custom_call.1} parent=1 // pred_check_branch
      %21 = sbr.rel (0) target = $region13
    $region12: #{tpu_custom_call.1} parent=1 // pred_region
      _
    $region13: #{tpu_custom_call.1} parent=1 // pred_fallthru
      _
    // Predicated region
    $region14: #{tpu_custom_call.1} parent=1 // pred_check
      _
    $region15: #{tpu_custom_call.1} parent=1 // pred_check_branch
      %23 = sbr.rel (0) target = $region17
    $region16: #{tpu_custom_call.1} parent=1 // pred_region
      _
    $region17: #{tpu_custom_call.1} parent=1 // pred_fallthru
      _
    // Predicated region
    $region18: #{tpu_custom_call.1} parent=1 // pred_check
      _
    $region19: #{tpu_custom_call.1} parent=1 // pred_check_branch
      %25 = sbr.rel (0) target = $region21
    $region20: #{tpu_custom_call.1} parent=1 // pred_region
      _
    $region21: #{tpu_custom_call.1} parent=1 // pred_fallthru
      _
    // Predicated region
    $region22: #{tpu_custom_call.1} parent=1 // pred_check
      _
    $region23: #{tpu_custom_call.1} parent=1 // pred_check_branch
      %27 = sbr.rel (0) target = $region25
    $region24: #{tpu_custom_call.1} parent=1 // pred_region
      _
    $region25: #{tpu_custom_call.1} parent=1 // pred_fallthru
      _
    // Predicated region
    $region26: #{tpu_custom_call.1} parent=1 // pred_check
      _
    $region27: #{tpu_custom_call.1} parent=1 // pred_check_branch
      %29 = sbr.rel (0) target = $region29
    $region28: #{tpu_custom_call.1} parent=1 // pred_region
      _
    $region29: #{tpu_custom_call.1} parent=1 // pred_fallthru
      _
    // Predicated region
    $region30: #{tpu_custom_call.1} parent=1 // pred_check
      _
    $region31: #{tpu_custom_call.1} parent=1 // pred_check_branch
      %31 = sbr.rel (0) target = $region33
    $region32: #{tpu_custom_call.1} parent=1 // pred_region
      _
    $region33: #{tpu_custom_call.1} parent=1 // pred_fallthru
      _
    // Predicated region
    $region34: #{tpu_custom_call.1} parent=1 // pred_check
      _
    $region35: #{tpu_custom_call.1} parent=1 // pred_check_branch
      %33 = sbr.rel (0) target = $region37
    $region36: #{tpu_custom_call.1} parent=1 // pred_region
      _
    $region37: #{tpu_custom_call.1} parent=1 // pred_fallthru
      _
    %v35 = vld [vmem:[%s0] sm:$0xf]
    %v36 = vld [vmem:[%s0 + $0x4] sm:$0xf]
    %v37 = vld [vmem:[%s1] sm:$0xf]
    %v38 = vld [vmem:[%s1 + $0x4] sm:$0xf]
    %v39 = vld [vmem:[%s1 + $0x8] sm:$0xf]
    %v40 = vld [vmem:[%s1 + $0xc] sm:$0xf]
    %v41 = vld [vmem:[%s1 + $0x10] sm:$0xf]
    %v42 = vld [vmem:[%s1 + $0x14] sm:$0xf]
    %v43 = vld [vmem:[%s1 + $0x18] sm:$0xf]
    %v44 = vld [vmem:[%s1 + $0x1c] sm:$0xf]
    %v53 = vunpack.c.l.b16 %v37
    %v54 = vunpack.c.l.b16 %v38
    %v55 = vunpack.c.l.b16 %v39
    %v56 = vunpack.c.l.b16 %v40
    %v57 = vunpack.c.l.b16 %v41
    %v58 = vunpack.c.l.b16 %v42
    %v59 = vunpack.c.l.b16 %v43
    %v60 = vunpack.c.l.b16 %v44
    %v61 = vpack.c.b16 %v54, %v53
    %v62 = vpack.c.b16 %v56, %v55
    %v63 = vpack.c.b16 %v58, %v57
    %v64 = vpack.c.b16 %v60, %v59
    %v67 = vunpack.c.l.b16 %v35
    %v68 = vunpack.c.l.b16 %v36
    %v69 = vpack.c.b16 %v68, %v67
    %vm71 = vcmask 130048
    %v73 = vsel %vm71, %v61, 0
    %v76 = vsel %vm71, %v62, 0
    %v79 = vsel %vm71, %v63, 0
    %v82 = vsel %vm71, %v64, 0
    %84 = vmatprep.subr.bf16.mxu0 0
    %85 = vmatpush1.bf16.msra.mxu0 %v69
    %86 = vmatprep.subr.bf16.mxu0 0
    %87 = vmatpush1.bf16.msra.mxu0 0
    %88 = vmatprep.subr.bf16.mxu0 0
    %89 = vmatpush1.bf16.msra.mxu0 0
    %90 = vmatprep.subr.bf16.mxu0 0
    %91 = vmatpush1.bf16.msra.mxu0 0
    %92 = vmatprep.subr.bf16.mxu0 0
    %93 = vmatpush1.bf16.msra.mxu0 0
    %94 = vmatprep.subr.bf16.mxu0 0
    %95 = vmatpush1.bf16.msra.mxu0 0
    %96 = vmatprep.subr.bf16.mxu0 0
    %97 = vmatpush1.bf16.msra.mxu0 0
    %98 = vmatprep.subr.bf16.mxu0 0
    %99 = vmatpush1.bf16.msra.mxu0 0
    %100 = vmatprep.subr.bf16.mxu0 0
    %101 = vmatpush1.bf16.msra.mxu0 0
    %102 = vmatprep.subr.bf16.mxu0 0
    %103 = vmatpush1.bf16.msra.mxu0 0
    %104 = vmatprep.subr.bf16.mxu0 0
    %105 = vmatpush1.bf16.msra.mxu0 0
    %106 = vmatprep.subr.bf16.mxu0 0
    %107 = vmatpush1.bf16.msra.mxu0 0
    %108 = vmatprep.subr.bf16.mxu0 0
    %109 = vmatpush1.bf16.msra.mxu0 0
    %110 = vmatprep.subr.bf16.mxu0 0
    %111 = vmatpush1.bf16.msra.mxu0 0
    %112 = vmatprep.subr.bf16.mxu0 0
    %113 = vmatpush1.bf16.msra.mxu0 0
    %114 = vmatprep.subr.bf16.mxu0 0
    %115 = vmatpush1.bf16.msra.mxu0 0
    %116 = vmatprep.mubr.bf16.mxu0 0
    %117 = vmatmul.mubr.bf16.gmra.mrb[0].mxu0 %v73
    %v118 = vpop.f32.mrb[0].mxu0
    %v119 = vadd.f32 0.0, %v118
    %v120 = vpop.f32.mrb[0].mxu0
    %v121 = vpop.f32.mrb[0].mxu0
    %v122 = vadd.f32 0.0, %v121
    %v123 = vpop.f32.mrb[0].mxu0
    %124 = vmatprep.mubr.bf16.mxu0 0
    %125 = vmatmul.mubr.bf16.gmra.mrb[0].mxu0 %v76
    %v126 = vpop.f32.mrb[0].mxu0
    %v127 = vadd.f32 0.0, %v126
    %v128 = vpop.f32.mrb[0].mxu0
    %v129 = vpop.f32.mrb[0].mxu0
    %v130 = vadd.f32 0.0, %v129
    %v131 = vpop.f32.mrb[0].mxu0
    %132 = vmatprep.mubr.bf16.mxu0 0
    %133 = vmatmul.mubr.bf16.gmra.mrb[0].mxu0 %v79
    %v134 = vpop.f32.mrb[0].mxu0
    %v135 = vadd.f32 0.0, %v134
    %v136 = vpop.f32.mrb[0].mxu0
    %v137 = vpop.f32.mrb[0].mxu0
    %v138 = vadd.f32 0.0, %v137
    %v139 = vpop.f32.mrb[0].mxu0
    %140 = vmatprep.mubr.bf16.mxu0 0
    %141 = vmatmul.mubr.bf16.gmra.mrb[0].mxu0 %v82
    %v142 = vpop.f32.mrb[0].mxu0
    %v143 = vadd.f32 0.0, %v142
    %v144 = vpop.f32.mrb[0].mxu0
    %v145 = vpop.f32.mrb[0].mxu0
    %v146 = vadd.f32 0.0, %v145
    %v147 = vpop.f32.mrb[0].mxu0
    %148 = vdwg.mxu0
    %v149 = vld [vmem:[%s2] sm:$0xff]
    %v150 = vld [vmem:[%s2 + $0x8] sm:$0xff]
    %v151 = vld [vmem:[%s2 + $0x10] sm:$0xff]
    %v152 = vld [vmem:[%s2 + $0x18] sm:$0xff]
    %154 = vset.pattern.permute.xlu0 0
    %155 = vperm.xlu0 %154, %v149
    %v156 = vpop.permute.xlu0 %155
    %159 = vset.pattern.permute.xlu0 0
    %160 = vperm.xlu0 %159, %v150
    %v161 = vpop.permute.xlu0 %160
    %164 = vset.pattern.permute.xlu0 0
    %165 = vperm.xlu0 %164, %v151
    %v166 = vpop.permute.xlu0 %165
    %169 = vset.pattern.permute.xlu0 0
    %170 = vperm.xlu0 %169, %v152
    %v171 = vpop.permute.xlu0 %170
    %v173 = vadd.f32 %v119, %v156
    %v174 = vadd.f32 %v122, %v161
    %v175 = vadd.f32 %v127, %v166
    %v176 = vadd.f32 %v130, %v171
    %v177 = vmax.f32 %v173, 0.0
    %v178 = vmax.f32 %v174, 0.0
    %v179 = vmax.f32 %v175, 0.0
    %v180 = vmax.f32 %v176, 0.0
    %v181 = vpack.c.bf16 %v178, %v177
    %v182 = vpack.c.bf16 %v180, %v179
    %v183 = vld [vmem:[%s3] sm:$0xf]
    %v184 = vld [vmem:[%s3 + $0x4] sm:$0xf]
    %v185 = vld [vmem:[%s3 + $0x8] sm:$0xf]
    %v186 = vld [vmem:[%s3 + $0xc] sm:$0xf]
    %v187 = vld [vmem:[%s4] sm:$0xff]
    %v188 = vld [vmem:[%s4 + $0x8] sm:$0xff]
    %v189 = vld [vmem:[%s4 + $0x10] sm:$0xff]
    %v190 = vld [vmem:[%s4 + $0x18] sm:$0xff]
    %192 = vset.pattern.permute.xlu0 0
    %193 = vperm.xlu0 %192, %v187
    %v194 = vpop.permute.xlu0 %193
    %197 = vset.pattern.permute.xlu0 0
    %198 = vperm.xlu0 %197, %v188
    %v199 = vpop.permute.xlu0 %198
    %202 = vset.pattern.permute.xlu0 0
    %203 = vperm.xlu0 %202, %v189
    %v204 = vpop.permute.xlu0 %203
    %207 = vset.pattern.permute.xlu0 0
    %208 = vperm.xlu0 %207, %v190
    %v209 = vpop.permute.xlu0 %208
    %v215 = vunpack.c.l.b16 %v183
    %v216 = vunpack.c.l.b16 %v184
    %v217 = vunpack.c.l.b16 %v185
    %v218 = vunpack.c.l.b16 %v186
    %v219 = vpack.c.b16 %v216, %v215
    %v220 = vpack.c.b16 %v218, %v217
    %vm221 = vcmask 261120
    %v223 = vsel %vm221, %v219, 0
    %v226 = vsel %vm221, %v220, 0
    %228 = vmatprep.subr.bf16.mxu0 0
    %229 = vmatpush1.bf16.msra.mxu0 %v181
    %230 = vmatprep.subr.bf16.mxu0 0
    %231 = vmatpush1.bf16.msra.mxu0 %v182
    %232 = vmatprep.subr.bf16.mxu0 0
    %233 = vmatpush1.bf16.msra.mxu0 0
    %234 = vmatprep.subr.bf16.mxu0 0
    %235 = vmatpush1.bf16.msra.mxu0 0
    %236 = vmatprep.subr.bf16.mxu0 0
    %237 = vmatpush1.bf16.msra.mxu0 0
    %238 = vmatprep.subr.bf16.mxu0 0
    %239 = vmatpush1.bf16.msra.mxu0 0
    %240 = vmatprep.subr.bf16.mxu0 0
    %241 = vmatpush1.bf16.msra.mxu0 0
    %242 = vmatprep.subr.bf16.mxu0 0
    %243 = vmatpush1.bf16.msra.mxu0 0
    %244 = vmatprep.subr.bf16.mxu0 0
    %245 = vmatpush1.bf16.msra.mxu0 0
    %246 = vmatprep.subr.bf16.mxu0 0
    %247 = vmatpush1.bf16.msra.mxu0 0
    %248 = vmatprep.subr.bf16.mxu0 0
    %249 = vmatpush1.bf16.msra.mxu0 0
    %250 = vmatprep.subr.bf16.mxu0 0
    %251 = vmatpush1.bf16.msra.mxu0 0
    %252 = vmatprep.subr.bf16.mxu0 0
    %253 = vmatpush1.bf16.msra.mxu0 0
    %254 = vmatprep.subr.bf16.mxu0 0
    %255 = vmatpush1.bf16.msra.mxu0 0
    %256 = vmatprep.subr.bf16.mxu0 0
    %257 = vmatpush1.bf16.msra.mxu0 0
    %258 = vmatprep.subr.bf16.mxu0 0
    %259 = vmatpush1.bf16.msra.mxu0 0
    %260 = vmatprep.mubr.bf16.mxu0 0
    %261 = vmatmul.mubr.bf16.gmra.mrb[0].mxu0 %v223
    %v262 = vpop.f32.mrb[0].mxu0
    %v263 = vadd.f32 %v194, %v262
    %v264 = vpop.f32.mrb[0].mxu0
    %v265 = vpop.f32.mrb[0].mxu0
    %v266 = vadd.f32 %v199, %v265
    %v267 = vpop.f32.mrb[0].mxu0
    %268 = vmatprep.mubr.bf16.mxu0 0
    %269 = vmatmul.mubr.bf16.gmra.mrb[0].mxu0 %v226
    %v270 = vpop.f32.mrb[0].mxu0
    %v271 = vadd.f32 %v204, %v270
    %v272 = vpop.f32.mrb[0].mxu0
    %v273 = vpop.f32.mrb[0].mxu0
    %v274 = vadd.f32 %v209, %v273
    %v275 = vpop.f32.mrb[0].mxu0
    %276 = vdwg.mxu0
    %v277 = vmax.f32 %v263, 0.0
    %v278 = vmax.f32 %v266, 0.0
    %v279 = vmax.f32 %v271, 0.0
    %v280 = vmax.f32 %v274, 0.0
    %v281 = vpack.c.bf16 %v278, %v277
    %v282 = vpack.c.bf16 %v280, %v279
    %v283 = vld [vmem:[%s5] sm:$0xf]
    %v284 = vld [vmem:[%s5 + $0x4] sm:$0xf]
    %v285 = vld [vmem:[%s5 + $0x8] sm:$0xf]
    %v286 = vld [vmem:[%s5 + $0xc] sm:$0xf]
    %v291 = vunpack.c.l.b16 %v283
    %v292 = vunpack.c.l.b16 %v284
    %v293 = vunpack.c.l.b16 %v285
    %v294 = vunpack.c.l.b16 %v286
    %v295 = vpack.c.b16 %v292, %v291
    %v296 = vpack.c.b16 %v294, %v293
    %v298 = vsel %vm221, %v295, 0
    %v301 = vsel %vm221, %v296, 0
    %303 = vmatprep.subr.bf16.mxu0 0
    %304 = vmatpush1.bf16.msra.mxu0 %v281
    %305 = vmatprep.subr.bf16.mxu0 0
    %306 = vmatpush1.bf16.msra.mxu0 %v282
    %307 = vmatprep.subr.bf16.mxu0 0
    %308 = vmatpush1.bf16.msra.mxu0 0
    %309 = vmatprep.subr.bf16.mxu0 0
    %310 = vmatpush1.bf16.msra.mxu0 0
    %311 = vmatprep.subr.bf16.mxu0 0
    %312 = vmatpush1.bf16.msra.mxu0 0
    %313 = vmatprep.subr.bf16.mxu0 0
    %314 = vmatpush1.bf16.msra.mxu0 0
    %315 = vmatprep.subr.bf16.mxu0 0
    %316 = vmatpush1.bf16.msra.mxu0 0
    %317 = vmatprep.subr.bf16.mxu0 0
    %318 = vmatpush1.bf16.msra.mxu0 0
    %319 = vmatprep.subr.bf16.mxu0 0
    %320 = vmatpush1.bf16.msra.mxu0 0
    %321 = vmatprep.subr.bf16.mxu0 0
    %322 = vmatpush1.bf16.msra.mxu0 0
    %323 = vmatprep.subr.bf16.mxu0 0
    %324 = vmatpush1.bf16.msra.mxu0 0
    %325 = vmatprep.subr.bf16.mxu0 0
    %326 = vmatpush1.bf16.msra.mxu0 0
    %327 = vmatprep.subr.bf16.mxu0 0
    %328 = vmatpush1.bf16.msra.mxu0 0
    %329 = vmatprep.subr.bf16.mxu0 0
    %330 = vmatpush1.bf16.msra.mxu0 0
    %331 = vmatprep.subr.bf16.mxu0 0
    %332 = vmatpush1.bf16.msra.mxu0 0
    %333 = vmatprep.subr.bf16.mxu0 0
    %334 = vmatpush1.bf16.msra.mxu0 0
    %335 = vmatprep.mubr.bf16.mxu0 0
    %336 = vmatmul.mubr.bf16.gmra.mrb[0].mxu0 %v298
    %v337 = vpop.f32.mrb[0].mxu0
    %v338 = vadd.f32 %v135, %v337
    %v339 = vpop.f32.mrb[0].mxu0
    %v340 = vpop.f32.mrb[0].mxu0
    %v341 = vadd.f32 %v138, %v340
    %v342 = vpop.f32.mrb[0].mxu0
    %343 = vmatprep.mubr.bf16.mxu0 0
    %344 = vmatmul.mubr.bf16.gmra.mrb[0].mxu0 %v301
    %v345 = vpop.f32.mrb[0].mxu0
    %v346 = vadd.f32 %v143, %v345
    %v347 = vpop.f32.mrb[0].mxu0
    %v348 = vpop.f32.mrb[0].mxu0
    %v349 = vadd.f32 %v146, %v348
    %v350 = vpop.f32.mrb[0].mxu0
    %351 = vdwg.mxu0
    %v352 = vld [vmem:[%s6] sm:$0xff]
    %v353 = vld [vmem:[%s6 + $0x8] sm:$0xff]
    %v354 = vld [vmem:[%s6 + $0x10] sm:$0xff]
    %v355 = vld [vmem:[%s6 + $0x18] sm:$0xff]
    %357 = vset.pattern.permute.xlu0 0
    %358 = vperm.xlu0 %357, %v352
    %v359 = vpop.permute.xlu0 %358
    %362 = vset.pattern.permute.xlu0 0
    %363 = vperm.xlu0 %362, %v353
    %v364 = vpop.permute.xlu0 %363
    %367 = vset.pattern.permute.xlu0 0
    %368 = vperm.xlu0 %367, %v354
    %v369 = vpop.permute.xlu0 %368
    %372 = vset.pattern.permute.xlu0 0
    %373 = vperm.xlu0 %372, %v355
    %v374 = vpop.permute.xlu0 %373
    %v376 = vadd.f32 %v338, %v359
    %v377 = vadd.f32 %v341, %v364
    %v378 = vadd.f32 %v346, %v369
    %v379 = vadd.f32 %v349, %v374
    %v380 = vmax.f32 %v376, 0.0
    %v381 = vmax.f32 %v377, 0.0
    %v382 = vmax.f32 %v378, 0.0
    %v383 = vmax.f32 %v379, 0.0
    %v384 = vpack.c.bf16 %v381, %v380
    %v385 = vpack.c.bf16 %v383, %v382
    %v386 = vld [vmem:[%s7] sm:$0x1]
    %s387 = sld [smem:[#allocation2]]
    %v388 = vstv %s387
    %v390 = vsel %vm221, %v386, 0
    %392 = vmatprep.subr.bf16.mxu0 0
    %393 = vmatpush1.bf16.msra.mxu0 %v384
    %394 = vmatprep.subr.bf16.mxu0 0
    %395 = vmatpush1.bf16.msra.mxu0 %v385
    %396 = vmatprep.subr.bf16.mxu0 0
    %397 = vmatpush1.bf16.msra.mxu0 0
    %398 = vmatprep.subr.bf16.mxu0 0
    %399 = vmatpush1.bf16.msra.mxu0 0
    %400 = vmatprep.subr.bf16.mxu0 0
    %401 = vmatpush1.bf16.msra.mxu0 0
    %402 = vmatprep.subr.bf16.mxu0 0
    %403 = vmatpush1.bf16.msra.mxu0 0
    %404 = vmatprep.subr.bf16.mxu0 0
    %405 = vmatpush1.bf16.msra.mxu0 0
    %406 = vmatprep.subr.bf16.mxu0 0
    %407 = vmatpush1.bf16.msra.mxu0 0
    %408 = vmatprep.subr.bf16.mxu0 0
    %409 = vmatpush1.bf16.msra.mxu0 0
    %410 = vmatprep.subr.bf16.mxu0 0
    %411 = vmatpush1.bf16.msra.mxu0 0
    %412 = vmatprep.subr.bf16.mxu0 0
    %413 = vmatpush1.bf16.msra.mxu0 0
    %414 = vmatprep.subr.bf16.mxu0 0
    %415 = vmatpush1.bf16.msra.mxu0 0
    %416 = vmatprep.subr.bf16.mxu0 0
    %417 = vmatpush1.bf16.msra.mxu0 0
    %418 = vmatprep.subr.bf16.mxu0 0
    %419 = vmatpush1.bf16.msra.mxu0 0
    %420 = vmatprep.subr.bf16.mxu0 0
    %421 = vmatpush1.bf16.msra.mxu0 0
    %422 = vmatprep.subr.bf16.mxu0 0
    %423 = vmatpush1.bf16.msra.mxu0 0
    %424 = vmatprep.mubr.bf16.mxu0 0
    %425 = vmatmul.mubr.bf16.gmra.mrb[0].mxu0 %v390
    %v426 = vpop.f32.mrb[0].mxu0
    %v427 = vadd.f32 %v388, %v426
    %v428 = vpop.f32.mrb[0].mxu0
    %v429 = vpop.f32.mrb[0].mxu0
    %v430 = vpop.f32.mrb[0].mxu0
    %431 = vdwg.mxu0
    %432 = vst [vmem:[#allocation3] sm:$0x1] %v427
    // Predicated region
    $region38: #{tpu_custom_call.1} parent=1 // pred_check
      _
    $region39: #{tpu_custom_call.1} parent=1 // pred_check_branch
      %434 = sbr.rel (0) target = $region41
    $region40: #{tpu_custom_call.1} parent=1 // pred_region
      %s436 = ssub.s32 16, 16
      %437 = vsyncadd [#allocation4], %s436
      %s439 = sshll.u32 [#allocation3], 4
      %s440 = int_to_ptr.vmem [resolvable:$true] %s439
      %442 = dma.vmem_to_hbm [thread:$0]  %s440, 16, %s9, [#allocation4]
    $region41: #{tpu_custom_call.1} parent=1 // pred_fallthru
      _
    // Predicated region
    $region42: #{tpu_custom_call.1} parent=1 // pred_check
      _
    $region43: #{tpu_custom_call.1} parent=1 // pred_check_branch
      %444 = sbr.rel (0) target = $region45
    $region44: #{tpu_custom_call.1} parent=1 // pred_region
      %445 = dma.done [#allocation4], 16
    $region45: #{tpu_custom_call.1} parent=1 // pred_fallthru
      _
    %446 = vsyncpa [#allocation4], 1

</llo_original>
